<compile_context>
chip_gen: v6e
topology: v6e:2x2x1
jax: 0.10.0
libtpu: 0.0.40
codegen_flags: <defaults>
</compile_context>

<pallas_src>
import functools

import jax
import jax.numpy as jnp
from jax.experimental import pallas as pl
from jax.experimental.pallas import tpu as pltpu

_NEG_BIG = -1e9  # softmax pad bias: exp(-1e9 - m) underflows to exactly 0 in f32


def _round_up(v, m):
    return ((v + m - 1) // m) * m


def _softmax_lastdim(z):
    # softmax along the feature axis (PyTorch dim=1 on a [B, F] tensor).
    m = jnp.max(z, axis=-1, keepdims=True)
    e = jnp.exp(z - m)
    # approx=True -> EUP vrcp slot (otherwise idle); ~1e-7 relative error.
    return e * pl.reciprocal(jnp.sum(e, axis=-1, keepdims=True), approx=True)


def mlp_attention_kernel(
    x_ref,
    w1a_ref, b1a_ref,   # fused+padded [fc1 | att1] : in      -> 2*mid_pad
    w2a_ref, b2a_ref,   # fused+padded [fc2 | att2] : mid_pad -> 2*out_pad
    w3p_ref, b3p_ref,   # lane-padded fc3           : out_pad -> n_pad
    o_ref,
    *, mid_pad, out_pad, matmul_dtype,
):
    # If B % block_b != 0, padded tail rows compute on undefined data; this is
    # harmless because all math is row-local and those rows are never written
    # back (Pallas clips the output writeback to the array bounds).
    x = x_ref[...].astype(matmul_dtype)

    # stage 1: one fused lane-dense MXU pass for fc1+att1, split at lane
    # boundary mid_pad (free view), softmax-gate + relu in f32 on the VPU.
    h1 = (jnp.dot(x, w1a_ref[...], preferred_element_type=jnp.float32)
          + b1a_ref[...])
    x1 = jnp.maximum(h1[:, :mid_pad] * _softmax_lastdim(h1[:, mid_pad:]), 0.0)

    # stage 2: same pattern for fc2+att2 (padded columns of x1 are exactly 0,
    # and the matching rows of w2a are zero, so padding is inert).
    h2 = (jnp.dot(x1.astype(matmul_dtype), w2a_ref[...],
                  preferred_element_type=jnp.float32) + b2a_ref[...])
    x2 = jnp.maximum(h2[:, :out_pad] * _softmax_lastdim(h2[:, out_pad:]), 0.0)

    # stage 3: classifier, lane-padded to a full 128-wide unmasked store.
    logits = (jnp.dot(x2.astype(matmul_dtype), w3p_ref[...],
                      preferred_element_type=jnp.float32) + b3p_ref[...])
    o_ref[...] = logits.astype(o_ref.dtype)


def prepare_params(params, matmul_dtype=jnp.bfloat16):
    """One-time weight preprocessing (call once, reuse for every forward).

    Fuses each fc/att pair into a single lane-dense matrix with both halves
    aligned to 128-lane boundaries, zero-pads the classifier to 128 output
    lanes, and casts matmul operands to bf16.  Attention-half padded bias
    columns are -1e9 so the extra softmax lanes contribute exactly zero.
    """
    (w1, b1, wa1, ba1, w2, b2, wa2, ba2, w3, b3) = params
    mid_feats = w1.shape[1]
    out_feats = w2.shape[1]
    n_classes = w3.shape[1]

    mid_pad = _round_up(mid_feats, 128)
    out_pad = _round_up(out_feats, 128)
    n_pad = _round_up(max(n_classes, 1), 128)

    def fuse(w_fc, b_fc, w_att, b_att, pad_to):
        n = w_fc.shape[1]
        wf = jnp.pad(w_fc, ((0, 0), (0, pad_to - n)))
        wa = jnp.pad(w_att, ((0, 0), (0, pad_to - n)))
        bf = jnp.pad(b_fc, ((0, 0), (0, pad_to - n)))
        ba = jnp.pad(b_att, ((0, 0), (0, pad_to - n)), constant_values=_NEG_BIG)
        wcat = jnp.concatenate([wf, wa], axis=1).astype(matmul_dtype)
        bcat = jnp.concatenate([bf, ba], axis=1).astype(jnp.float32)
        return wcat, bcat

    w1a, b1a = fuse(w1, b1, wa1, ba1, mid_pad)            # [in, 2*mid_pad]
    w2r = jnp.pad(w2, ((0, mid_pad - mid_feats), (0, 0)))  # zero rows for x1 pad
    wa2r = jnp.pad(wa2, ((0, mid_pad - mid_feats), (0, 0)))
    w2a, b2a = fuse(w2r, b2, wa2r, ba2, out_pad)          # [mid_pad, 2*out_pad]
    w3p = jnp.pad(w3, ((0, out_pad - out_feats),
                       (0, n_pad - n_classes))).astype(matmul_dtype)
    b3p = jnp.pad(b3, ((0, 0), (0, n_pad - n_classes))).astype(jnp.float32)

    fused = tuple(jax.device_put(a) for a in (w1a, b1a, w2a, b2a, w3p, b3p))
    return fused, n_classes


@functools.partial(jax.jit, static_argnames=("n_classes", "block_b", "out_dtype"))
def mlp_attention_forward(x, fused, *, n_classes, block_b=2048,
                          out_dtype=jnp.float32):
    # x may be >2D; flatten everything past the batch dim (torch.flatten).
    if x.ndim > 2:
        x = x.reshape(x.shape[0], -1)
    B, in_feats = x.shape

    w1a, b1a, w2a, b2a, w3p, b3p = fused
    mid_pad = w1a.shape[1] // 2
    out_pad = w2a.shape[1] // 2
    n_pad = w3p.shape[1]
    matmul_dtype = w1a.dtype

    # Batch tile: big tiles to amortize ~0.35 us/step grid overhead; keep >=2
    # grid steps when B allows so v7x's 2 TensorCores both get work.
    if block_b >= B:
        if B >= 32:
            block_b = _round_up(-(-B // 2), 16)   # ceil(B/2), 16-aligned
        else:
            block_b = B                            # single full-dim block
    else:
        block_b = max(16, (block_b // 16) * 16)
    grid = (pl.cdiv(B, block_b),)

    itemsize_mm = jnp.dtype(matmul_dtype).itemsize
    flops = 2 * B * (in_feats * 2 * mid_pad
                     + mid_pad * 2 * out_pad
                     + out_pad * n_pad)
    transcendentals = B * (mid_pad + out_pad)          # softmax exps
    bytes_accessed = (
        B * in_feats * x.dtype.itemsize
        + (in_feats * 2 * mid_pad + mid_pad * 2 * out_pad
           + out_pad * n_pad) * itemsize_mm
        + (2 * mid_pad + 2 * out_pad + n_pad) * 4       # biases (f32)
        + B * n_pad * 2                                 # output (bf16)
    )

    def row_map(i):
        return (i, 0)

    def full_map(i):
        return (0, 0)

    kernel = functools.partial(
        mlp_attention_kernel,
        mid_pad=mid_pad, out_pad=out_pad, matmul_dtype=matmul_dtype)

    out_padded = pl.pallas_call(
        kernel,
        out_shape=jax.ShapeDtypeStruct((B, n_pad), jnp.bfloat16),
        grid_spec=pltpu.PrefetchScalarGridSpec(
            num_scalar_prefetch=0,
            grid=grid,
            in_specs=[
                pl.BlockSpec((block_b, in_feats), row_map),          # x (f32)
                pl.BlockSpec((in_feats, 2 * mid_pad), full_map),     # [w1|wa1]
                pl.BlockSpec((1, 2 * mid_pad), full_map),            # [b1|ba1]
                pl.BlockSpec((mid_pad, 2 * out_pad), full_map),      # [w2|wa2]
                pl.BlockSpec((1, 2 * out_pad), full_map),            # [b2|ba2]
                pl.BlockSpec((out_pad, n_pad), full_map),            # w3 (pad)
                pl.BlockSpec((1, n_pad), full_map),                  # b3 (pad)
            ],
            out_specs=pl.BlockSpec((block_b, n_pad), row_map),
        ),
        compiler_params=pltpu.CompilerParams(
            dimension_semantics=("parallel",)),
        cost_estimate=pl.CostEstimate(
            flops=flops,
            transcendentals=transcendentals,
            bytes_accessed=bytes_accessed),
    )(x, w1a, b1a, w2a, b2a, w3p, b3p)

    return out_padded[:, :n_classes].astype(out_dtype)


def init_params(key, in_feats, mid_feats, out_feats, n_classes):
    """Deterministic synthetic init. Weights stored as [in_dim, out_dim]."""
    ks = jax.random.split(key, 10)

    def lin(kw, kb, fan_in, fan_out):
        bound = 1.0 / jnp.sqrt(fan_in)
        w = jax.random.uniform(kw, (fan_in, fan_out), jnp.float32, -bound, bound)
        b = jax.random.uniform(kb, (1, fan_out), jnp.float32, -bound, bound)
        return w, b

    w1, b1 = lin(ks[0], ks[1], in_feats, mid_feats)     # fc1
    wa1, ba1 = lin(ks[2], ks[3], in_feats, mid_feats)   # att1
    w2, b2 = lin(ks[4], ks[5], mid_feats, out_feats)    # fc2
    wa2, ba2 = lin(ks[6], ks[7], mid_feats, out_feats)  # att2
    w3, b3 = lin(ks[8], ks[9], out_feats, n_classes)    # fc3
    # TODO(synk): fc4/fc5 + F.normalize belong to forward_constrative (not the
    # forward pass implemented here), so they are omitted.
    return (w1, b1, wa1, ba1, w2, b2, wa2, ba2, w3, b3)


def reference_forward(x, params, matmul_dtype=jnp.float32):
    """Plain-JAX reference identical to the PyTorch forward (optionally with
    bf16 matmul inputs + f32 accumulation to match the kernel's fast path)."""
    if x.ndim > 2:
        x = x.reshape(x.shape[0], -1)
    (w1, b1, wa1, ba1, w2, b2, wa2, ba2, w3, b3) = params

    def mm(a, w):
        return jnp.dot(a.astype(matmul_dtype), w.astype(matmul_dtype),
                       preferred_element_type=jnp.float32)

    x1 = mm(x, w1) + b1
    a1 = jax.nn.softmax(mm(x, wa1) + ba1, axis=1)
    x1 = jax.nn.relu(x1 * a1)
    x2 = mm(x1, w2) + b2
    a2 = jax.nn.softmax(mm(x1, wa2) + ba2, axis=1)
    x2 = jax.nn.relu(x2 * a2)
    return mm(x2, w3) + b3


if __name__ == "__main__":
    # small shapes consistent with the module: flattened input features = 32
    B, in_feats, mid_feats, out_feats, n_classes = 8, 32, 64, 32, 8

    key = jax.random.PRNGKey(0)
    kx, kp = jax.random.split(key)
    x = jax.random.normal(kx, (B, 2, 4, 4), jnp.float32)   # flattens to 32 feats
    params = init_params(kp, in_feats, mid_feats, out_feats, n_classes)

    # one-time weight fusion/padding/bf16 cast (hoisted out of the hot path)
    fused, n_cls = prepare_params(params, matmul_dtype=jnp.bfloat16)

    out = mlp_attention_forward(x, fused, n_classes=n_cls, block_b=2048)
    out = jax.block_until_ready(out)
    assert out.shape == (B, n_classes)
    assert bool(jnp.all(jnp.isfinite(out)))

    # Reference with identical bf16-input / f32-accumulate math; the kernel
    # additionally rounds logits to bf16, hence the ~1e-3 absolute tolerance.
    ref_bf16 = reference_forward(x, params, matmul_dtype=jnp.bfloat16)
    err_bf16 = jnp.max(jnp.abs(out - ref_bf16))
    assert jnp.allclose(out, ref_bf16, atol=5e-3, rtol=5e-2), (
        f"max err vs bf16 reference {err_bf16}")

    # Full-f32 reference (PyTorch-equivalent), loose tolerance for bf16 path.
    ref_f32 = reference_forward(x, params, matmul_dtype=jnp.float32)
    err_f32 = jnp.max(jnp.abs(out - ref_f32))
    assert jnp.allclose(out, ref_f32, atol=3e-2, rtol=3e-2), (
        f"max err vs f32 reference {err_f32}")

    print("KERNEL_OK")
</pallas_src>

<mosaic_0001>
module attributes {stable_mosaic.version = 11 : i64} {
  func.func @mlp_attention_kernel(%arg0: i32, %arg1: memref<8x32xf32, #tpu.memory_space<vmem>>, %arg2: memref<32x256xbf16, #tpu.memory_space<vmem>>, %arg3: memref<1x256xf32, #tpu.memory_space<vmem>>, %arg4: memref<128x256xbf16, #tpu.memory_space<vmem>>, %arg5: memref<1x256xf32, #tpu.memory_space<vmem>>, %arg6: memref<128x128xbf16, #tpu.memory_space<vmem>>, %arg7: memref<1x128xf32, #tpu.memory_space<vmem>>, %arg8: memref<8x128xbf16, #tpu.memory_space<vmem>>) attributes {dimension_semantics = [#tpu.dimension_semantics<parallel>], iteration_bounds = array<i64: 1>, scalar_prefetch = 0 : i64, scratch_operands = 0 : i64, tpu.core_type = #tpu.core_type<tc>, window_params = [{transform_indices = @transform_0, window_bounds = array<i64: 8, 32>}, {pipeline_mode = #tpu.pipeline_mode<synchronous>, transform_indices = @transform_1, window_bounds = array<i64: 32, 256>}, {pipeline_mode = #tpu.pipeline_mode<synchronous>, transform_indices = @transform_2, window_bounds = array<i64: 1, 256>}, {pipeline_mode = #tpu.pipeline_mode<synchronous>, transform_indices = @transform_3, window_bounds = array<i64: 128, 256>}, {pipeline_mode = #tpu.pipeline_mode<synchronous>, transform_indices = @transform_4, window_bounds = array<i64: 1, 256>}, {pipeline_mode = #tpu.pipeline_mode<synchronous>, transform_indices = @transform_5, window_bounds = array<i64: 128, 128>}, {pipeline_mode = #tpu.pipeline_mode<synchronous>, transform_indices = @transform_6, window_bounds = array<i64: 1, 128>}, {transform_indices = @transform_7, window_bounds = array<i64: 8, 128>}]} {
    %c0 = arith.constant 0 : index
    %c0_0 = arith.constant 0 : index
    %0 = vector.load %arg1[%c0, %c0_0] : memref<8x32xf32, #tpu.memory_space<vmem>>, vector<8x32xf32>
    %1 = arith.truncf %0 : vector<8x32xf32> to vector<8x32xbf16>
    %c0_1 = arith.constant 0 : index
    %c0_2 = arith.constant 0 : index
    %2 = vector.load %arg2[%c0_1, %c0_2] : memref<32x256xbf16, #tpu.memory_space<vmem>>, vector<32x256xbf16>
    %cst = arith.constant dense<0.000000e+00> : vector<8x256xf32>
    %3 = tpu.matmul %1, %2, %cst {dimension_numbers = #tpu.dot_dimension_numbers<[1], [0], [0], [1], [0, 0, 1, 1], [], []>} : vector<8x32xbf16>, vector<32x256xbf16>, vector<8x256xf32> -> vector<8x256xf32>
    %c0_3 = arith.constant 0 : index
    %c0_4 = arith.constant 0 : index
    %4 = vector.load %arg3[%c0_3, %c0_4] : memref<1x256xf32, #tpu.memory_space<vmem>>, vector<1x256xf32>
    %5 = vector.broadcast %4 : vector<1x256xf32> to vector<8x256xf32>
    %6 = arith.addf %3, %5 : vector<8x256xf32>
    %7 = vector.extract_strided_slice %6 {offsets = [0, 0], sizes = [8, 128], strides = [1, 1]} : vector<8x256xf32> to vector<8x128xf32>
    %8 = vector.extract_strided_slice %6 {offsets = [0, 128], sizes = [8, 128], strides = [1, 1]} : vector<8x256xf32> to vector<8x128xf32>
    %cst_5 = arith.constant dense<0xFF800000> : vector<8xf32>
    %9 = vector.multi_reduction <maximumf>, %8, %cst_5 [1] : vector<8x128xf32> to vector<8xf32>
    %10 = vector.shape_cast %9 : vector<8xf32> to vector<8x1xf32>
    %11 = vector.broadcast %10 : vector<8x1xf32> to vector<8x128xf32>
    %12 = arith.subf %8, %11 : vector<8x128xf32>
    %13 = math.exp %12 : vector<8x128xf32>
    %cst_6 = arith.constant dense<0.000000e+00> : vector<8xf32>
    %14 = vector.multi_reduction <add>, %13, %cst_6 [1] : vector<8x128xf32> to vector<8xf32>
    %15 = vector.shape_cast %14 : vector<8xf32> to vector<8x1xf32>
    %16 = tpu.reciprocal %15 {approx = true} : vector<8x1xf32> -> vector<8x1xf32>
    %17 = vector.broadcast %16 : vector<8x1xf32> to vector<8x128xf32>
    %18 = arith.mulf %13, %17 : vector<8x128xf32>
    %19 = arith.mulf %7, %18 : vector<8x128xf32>
    %cst_7 = arith.constant 0.000000e+00 : f32
    %20 = vector.broadcast %cst_7 : f32 to vector<8x128xf32>
    %21 = arith.maximumf %19, %20 : vector<8x128xf32>
    %22 = arith.truncf %21 : vector<8x128xf32> to vector<8x128xbf16>
    %c0_8 = arith.constant 0 : index
    %c0_9 = arith.constant 0 : index
    %23 = vector.load %arg4[%c0_8, %c0_9] : memref<128x256xbf16, #tpu.memory_space<vmem>>, vector<128x256xbf16>
    %cst_10 = arith.constant dense<0.000000e+00> : vector<8x256xf32>
    %24 = tpu.matmul %22, %23, %cst_10 {dimension_numbers = #tpu.dot_dimension_numbers<[1], [0], [0], [1], [0, 0, 1, 1], [], []>} : vector<8x128xbf16>, vector<128x256xbf16>, vector<8x256xf32> -> vector<8x256xf32>
    %c0_11 = arith.constant 0 : index
    %c0_12 = arith.constant 0 : index
    %25 = vector.load %arg5[%c0_11, %c0_12] : memref<1x256xf32, #tpu.memory_space<vmem>>, vector<1x256xf32>
    %26 = vector.broadcast %25 : vector<1x256xf32> to vector<8x256xf32>
    %27 = arith.addf %24, %26 : vector<8x256xf32>
    %28 = vector.extract_strided_slice %27 {offsets = [0, 0], sizes = [8, 128], strides = [1, 1]} : vector<8x256xf32> to vector<8x128xf32>
    %29 = vector.extract_strided_slice %27 {offsets = [0, 128], sizes = [8, 128], strides = [1, 1]} : vector<8x256xf32> to vector<8x128xf32>
    %cst_13 = arith.constant dense<0xFF800000> : vector<8xf32>
    %30 = vector.multi_reduction <maximumf>, %29, %cst_13 [1] : vector<8x128xf32> to vector<8xf32>
    %31 = vector.shape_cast %30 : vector<8xf32> to vector<8x1xf32>
    %32 = vector.broadcast %31 : vector<8x1xf32> to vector<8x128xf32>
    %33 = arith.subf %29, %32 : vector<8x128xf32>
    %34 = math.exp %33 : vector<8x128xf32>
    %cst_14 = arith.constant dense<0.000000e+00> : vector<8xf32>
    %35 = vector.multi_reduction <add>, %34, %cst_14 [1] : vector<8x128xf32> to vector<8xf32>
    %36 = vector.shape_cast %35 : vector<8xf32> to vector<8x1xf32>
    %37 = tpu.reciprocal %36 {approx = true} : vector<8x1xf32> -> vector<8x1xf32>
    %38 = vector.broadcast %37 : vector<8x1xf32> to vector<8x128xf32>
    %39 = arith.mulf %34, %38 : vector<8x128xf32>
    %40 = arith.mulf %28, %39 : vector<8x128xf32>
    %cst_15 = arith.constant 0.000000e+00 : f32
    %41 = vector.broadcast %cst_15 : f32 to vector<8x128xf32>
    %42 = arith.maximumf %40, %41 : vector<8x128xf32>
    %43 = arith.truncf %42 : vector<8x128xf32> to vector<8x128xbf16>
    %c0_16 = arith.constant 0 : index
    %c0_17 = arith.constant 0 : index
    %44 = vector.load %arg6[%c0_16, %c0_17] : memref<128x128xbf16, #tpu.memory_space<vmem>>, vector<128x128xbf16>
    %cst_18 = arith.constant dense<0.000000e+00> : vector<8x128xf32>
    %45 = tpu.matmul %43, %44, %cst_18 {dimension_numbers = #tpu.dot_dimension_numbers<[1], [0], [0], [1], [0, 0, 1, 1], [], []>} : vector<8x128xbf16>, vector<128x128xbf16>, vector<8x128xf32> -> vector<8x128xf32>
    %c0_19 = arith.constant 0 : index
    %c0_20 = arith.constant 0 : index
    %46 = vector.load %arg7[%c0_19, %c0_20] : memref<1x128xf32, #tpu.memory_space<vmem>>, vector<1x128xf32>
    %47 = vector.broadcast %46 : vector<1x128xf32> to vector<8x128xf32>
    %48 = arith.addf %45, %47 : vector<8x128xf32>
    %49 = arith.truncf %48 : vector<8x128xf32> to vector<8x128xbf16>
    %c0_21 = arith.constant 0 : index
    %c0_22 = arith.constant 0 : index
    %50 = vector.load %arg8[%c0_21, %c0_22] : memref<8x128xbf16, #tpu.memory_space<vmem>>, vector<8x128xbf16>
    tpu.vector_store %arg8[%c0_21, %c0_22], %49 {strides = array<i32>} : memref<8x128xbf16, #tpu.memory_space<vmem>>, vector<8x128xbf16>,
    return
  }
  func.func @transform_0(%arg0: i32) -> (i32, i32) {
    %c0_i32 = arith.constant 0 : i32
    %c0_i32_0 = arith.constant 0 : i32
    return %arg0, %c0_i32 : i32, i32
  }
  func.func @transform_1(%arg0: i32) -> (i32, i32) {
    %c0_i32 = arith.constant 0 : i32
    %c0_i32_0 = arith.constant 0 : i32
    %c0_i32_1 = arith.constant 0 : i32
    return %c0_i32, %c0_i32_0 : i32, i32
  }
  func.func @transform_2(%arg0: i32) -> (i32, i32) {
    %c0_i32 = arith.constant 0 : i32
    %c0_i32_0 = arith.constant 0 : i32
    %c0_i32_1 = arith.constant 0 : i32
    return %c0_i32, %c0_i32_0 : i32, i32
  }
  func.func @transform_3(%arg0: i32) -> (i32, i32) {
    %c0_i32 = arith.constant 0 : i32
    %c0_i32_0 = arith.constant 0 : i32
    %c0_i32_1 = arith.constant 0 : i32
    return %c0_i32, %c0_i32_0 : i32, i32
  }
  func.func @transform_4(%arg0: i32) -> (i32, i32) {
    %c0_i32 = arith.constant 0 : i32
    %c0_i32_0 = arith.constant 0 : i32
    %c0_i32_1 = arith.constant 0 : i32
    return %c0_i32, %c0_i32_0 : i32, i32
  }
  func.func @transform_5(%arg0: i32) -> (i32, i32) {
    %c0_i32 = arith.constant 0 : i32
    %c0_i32_0 = arith.constant 0 : i32
    %c0_i32_1 = arith.constant 0 : i32
    return %c0_i32, %c0_i32_0 : i32, i32
  }
  func.func @transform_6(%arg0: i32) -> (i32, i32) {
    %c0_i32 = arith.constant 0 : i32
    %c0_i32_0 = arith.constant 0 : i32
    %c0_i32_1 = arith.constant 0 : i32
    return %c0_i32, %c0_i32_0 : i32, i32
  }
  func.func @transform_7(%arg0: i32) -> (i32, i32) {
    %c0_i32 = arith.constant 0 : i32
    %c0_i32_0 = arith.constant 0 : i32
    return %arg0, %c0_i32 : i32, i32
  }
}

</mosaic_0001>

<llo_original>
// kernel: mlp_attention_forward.1
$region0: #{mlp_attention_forward.1}
  #allocation0 [shape = 'u32[]', space=smem, size = 0x4, offset = 0x4, fixed_abs, tag = 'smem constant byte address 0x4 - core index']
  #allocation1 [shape = 'u32[144,128]{1,0:T(1,128)}', space=vmem, size = 0x12000, scoped, tag = 'internal scratch']
  %s0 = inlined_call_operand.vmem [shape: f32[8,32], index: 0, kind: input, shape index: {}]
  %s1 = inlined_call_operand.vmem [shape: bf16[32,256], index: 1, kind: input, shape index: {}]
  %s2 = inlined_call_operand.vmem [shape: f32[1,256], index: 2, kind: input, shape index: {}]
  %s3 = inlined_call_operand.hbm [shape: bf16[128,256], index: 3, kind: input, shape index: {}]
  %s4 = inlined_call_operand.vmem [shape: f32[1,256], index: 4, kind: input, shape index: {}]
  %s5 = inlined_call_operand.hbm [shape: bf16[128,128], index: 5, kind: input, shape index: {}]
  %s6 = inlined_call_operand.vmem [shape: f32[1,128], index: 6, kind: input, shape index: {}]
  %s7 = inlined_call_operand.vmem [shape: bf16[8,128], index: 7, kind: output, shape index: {}]
  %s8 = sld [smem:[#allocation0]]
  $region46: #{mlp_attention_forward.1} parent=0
    _
  %s10 = ssub.s32 1, %s8
  %s11 = scalar_select 0, %s10, %s8
  $region1: #{mlp_attention_forward.1} parent=0
    #allocation2 [shape = 'u8[65536]{0}', space=vmem, size = 0x10000, scoped, tag = 'input window, operand 3, single buffered']
    #allocation3 [shape = 's32[1]{0}', space=sflag, size = 0x4, scoped, tag = 'scoped memory for mlp_attention_forward.1']
    #allocation4 [shape = 'u8[32768]{0}', space=vmem, size = 0x8000, scoped, tag = 'input window, operand 5, single buffered']
    #allocation5 [shape = 's32[1]{0}', space=sflag, size = 0x4, scoped, tag = 'scoped memory for mlp_attention_forward.1']
    %12 = vsyncpa [#allocation3], 0
    %13 = vsyncpa [#allocation5], 0
    // Predicated region
    $region2: #{mlp_attention_forward.1} parent=1 // pred_check
      _
    $region3: #{mlp_attention_forward.1} parent=1 // pred_check_branch
      %15 = sbr.rel (0) target = $region5
    $region4: #{mlp_attention_forward.1} parent=1 // pred_region
      _
    $region5: #{mlp_attention_forward.1} parent=1 // pred_fallthru
      _
    // Predicated region
    $region6: #{mlp_attention_forward.1} parent=1 // pred_check
      _
    $region7: #{mlp_attention_forward.1} parent=1 // pred_check_branch
      %17 = sbr.rel (0) target = $region9
    $region8: #{mlp_attention_forward.1} parent=1 // pred_region
      _
    $region9: #{mlp_attention_forward.1} parent=1 // pred_fallthru
      _
    // Predicated region
    $region10: #{mlp_attention_forward.1} parent=1 // pred_check
      _
    $region11: #{mlp_attention_forward.1} parent=1 // pred_check_branch
      %19 = sbr.rel (0) target = $region13
    $region12: #{mlp_attention_forward.1} parent=1 // pred_region
      _
    $region13: #{mlp_attention_forward.1} parent=1 // pred_fallthru
      _
    // Predicated region
    $region14: #{mlp_attention_forward.1} parent=1 // pred_check
      _
    $region15: #{mlp_attention_forward.1} parent=1 // pred_check_branch
      %21 = sbr.rel (0) target = $region17
    $region16: #{mlp_attention_forward.1} parent=1 // pred_region
      %s23 = ssub.s32 2048, 2048
      %24 = vsyncadd [#allocation3], %s23
      %s25 = sshll.u32 [#allocation2], 4
      %s26 = int_to_ptr.vmem [resolvable:$true] %s25
      %31 = dma.hbm_to_vmem [thread:$0]  %s3, 2048, %s26, [#allocation3], 128, 128, 8
    $region17: #{mlp_attention_forward.1} parent=1 // pred_fallthru
      _
    // Predicated region
    $region18: #{mlp_attention_forward.1} parent=1 // pred_check
      _
    $region19: #{mlp_attention_forward.1} parent=1 // pred_check_branch
      %33 = sbr.rel (0) target = $region21
    $region20: #{mlp_attention_forward.1} parent=1 // pred_region
      _
    $region21: #{mlp_attention_forward.1} parent=1 // pred_fallthru
      _
    // Predicated region
    $region22: #{mlp_attention_forward.1} parent=1 // pred_check
      _
    $region23: #{mlp_attention_forward.1} parent=1 // pred_check_branch
      %35 = sbr.rel (0) target = $region25
    $region24: #{mlp_attention_forward.1} parent=1 // pred_region
      %s37 = ssub.s32 1024, 1024
      %38 = vsyncadd [#allocation5], %s37
      %s39 = sshll.u32 [#allocation4], 4
      %s40 = int_to_ptr.vmem [resolvable:$true] %s39
      %45 = dma.hbm_to_vmem [thread:$0]  %s5, 1024, %s40, [#allocation5], 64, 64, 4
    $region25: #{mlp_attention_forward.1} parent=1 // pred_fallthru
      _
    // Predicated region
    $region26: #{mlp_attention_forward.1} parent=1 // pred_check
      _
    $region27: #{mlp_attention_forward.1} parent=1 // pred_check_branch
      %47 = sbr.rel (0) target = $region29
    $region28: #{mlp_attention_forward.1} parent=1 // pred_region
      _
    $region29: #{mlp_attention_forward.1} parent=1 // pred_fallthru
      _
    // Predicated region
    $region30: #{mlp_attention_forward.1} parent=1 // pred_check
      _
    $region31: #{mlp_attention_forward.1} parent=1 // pred_check_branch
      %49 = sbr.rel (0) target = $region33
    $region32: #{mlp_attention_forward.1} parent=1 // pred_region
      %50 = dma.done [#allocation3], 2048
    $region33: #{mlp_attention_forward.1} parent=1 // pred_fallthru
      _
    // Predicated region
    $region34: #{mlp_attention_forward.1} parent=1 // pred_check
      _
    $region35: #{mlp_attention_forward.1} parent=1 // pred_check_branch
      %52 = sbr.rel (0) target = $region37
    $region36: #{mlp_attention_forward.1} parent=1 // pred_region
      %53 = dma.done [#allocation5], 1024
    $region37: #{mlp_attention_forward.1} parent=1 // pred_fallthru
      _
    %v55 = vld [vmem:[%s0] sm:$0xff]
    %v56 = vpack.c.bf16 %v55, %v55
    %v57 = vld [vmem:[%s1] sm:$0xff]
    %v58 = vld [vmem:[%s1 + $0x8] sm:$0xff]
    %v59 = vld [vmem:[%s1 + $0x10] sm:$0xff]
    %v60 = vld [vmem:[%s1 + $0x18] sm:$0xff]
    %v61 = vld [vmem:[%s2] sm:$0x3]
    %v63 = vlaneseq
    %v64 = vshrl.u32 %v63, 7
    %v65 = vsub.s32 0, %v64
    %v66 = vrot.slane %v61, %v65
    %v67 = vlaneseq
    %v68 = vshrl.u32 %v67, 7
    %v69 = vsub.s32 1, %v68
    %v70 = vrot.slane %v61, %v69
    %v77 = vunpack.c.l.b16 %v57
    %v78 = vunpack.c.h.b16 %v57
    %v79 = vunpack.c.l.b16 %v58
    %v80 = vunpack.c.h.b16 %v58
    %v81 = vunpack.c.l.b16 %v59
    %v82 = vunpack.c.h.b16 %v59
    %v83 = vunpack.c.l.b16 %v60
    %v84 = vunpack.c.h.b16 %v60
    %v85 = vpack.c.b16 %v79, %v77
    %v86 = vpack.c.b16 %v80, %v78
    %v87 = vpack.c.b16 %v83, %v81
    %v88 = vpack.c.b16 %v84, %v82
    %vm93 = vcmask 261120
    %v95 = vsel %vm93, %v56, 0
    %97 = vmatprep.subr.bf16.mxu0 0
    %98 = vmatpush1.bf16.msra.mxu0 0
    %99 = vmatprep.subr.bf16.mxu0 0
    %100 = vmatpush1.bf16.msra.mxu0 0
    %101 = vmatprep.subr.bf16.mxu0 0
    %102 = vmatpush1.bf16.msra.mxu0 0
    %103 = vmatprep.subr.bf16.mxu0 0
    %104 = vmatpush1.bf16.msra.mxu0 0
    %105 = vmatprep.subr.bf16.mxu0 0
    %106 = vmatpush1.bf16.msra.mxu0 0
    %107 = vmatprep.subr.bf16.mxu0 0
    %108 = vmatpush1.bf16.msra.mxu0 0
    %109 = vmatprep.subr.bf16.mxu0 %v88
    %110 = vmatpush1.bf16.msra.mxu0 %v87
    %111 = vmatprep.subr.bf16.mxu0 %v86
    %112 = vmatpush1.bf16.msra.mxu0 %v85
    %113 = vmatprep.subr.bf16.mxu0 0
    %114 = vmatpush2.bf16.msra.mxu0 0
    %115 = vmatprep.subr.bf16.mxu0 0
    %116 = vmatpush2.bf16.msra.mxu0 0
    %117 = vmatprep.subr.bf16.mxu0 0
    %118 = vmatpush2.bf16.msra.mxu0 0
    %119 = vmatprep.subr.bf16.mxu0 0
    %120 = vmatpush2.bf16.msra.mxu0 0
    %121 = vmatprep.subr.bf16.mxu0 0
    %122 = vmatpush2.bf16.msra.mxu0 0
    %123 = vmatprep.subr.bf16.mxu0 0
    %124 = vmatpush2.bf16.msra.mxu0 0
    %125 = vmatprep.subr.bf16.mxu0 0
    %126 = vmatpush2.bf16.msra.mxu0 0
    %127 = vmatprep.subr.bf16.mxu0 0
    %128 = vmatpush2.bf16.msra.mxu0 0
    %129 = vmatprep.mubr.bf16.mxu0 0
    %130 = vmatmul.mubr.bf16.gmra.mxu0 %v95
    %v131 = vpop.f32.mrf.mxu0
    %v132 = vadd.f32 %v66, %v131
    %v133 = vpop.f32.mrf.mxu0
    %v134 = vadd.f32 %v70, %v133
    %v135 = vpop.f32.mrf.mxu0
    %v136 = vpop.f32.mrf.mxu0
    %137 = vdwg.mxu0
    %138 = vmax.xlane.f32.xlu0 %v134
    %v139 = vpop.xlane.xlu0 %138
    %v140 = vsub.f32 %v134, %v139
    %v141 = vmul.f32 %v140, 1.442695
    %v142 = vpow.pop %v141
    %143 = vadd.xlane.f32.xlu0 %v142
    %v144 = vpop.xlane.xlu0 %143
    %v145 = vrcp.pop %v144
    %v146 = vmul.f32 %v142, %v145
    %v147 = vmul.f32 %v132, %v146
    %v148 = vmax.f32 %v147, 0.0
    %v149 = vpack.c.bf16 %v148, %v148
    %v150 = vld [vmem:[#allocation2] sm:$0xff]
    %v151 = vld [vmem:[#allocation2 + $0x8] sm:$0xff]
    %v152 = vld [vmem:[#allocation2 + $0x10] sm:$0xff]
    %v153 = vld [vmem:[#allocation2 + $0x18] sm:$0xff]
    %v154 = vld [vmem:[#allocation2 + $0x20] sm:$0xff]
    %v155 = vld [vmem:[#allocation2 + $0x28] sm:$0xff]
    %v156 = vld [vmem:[#allocation2 + $0x30] sm:$0xff]
    %v157 = vld [vmem:[#allocation2 + $0x38] sm:$0xff]
    %v158 = vld [vmem:[#allocation2 + $0x40] sm:$0xff]
    %v159 = vld [vmem:[#allocation2 + $0x48] sm:$0xff]
    %v160 = vld [vmem:[#allocation2 + $0x50] sm:$0xff]
    %v161 = vld [vmem:[#allocation2 + $0x58] sm:$0xff]
    %v162 = vld [vmem:[#allocation2 + $0x60] sm:$0xff]
    %v163 = vld [vmem:[#allocation2 + $0x68] sm:$0xff]
    %v164 = vld [vmem:[#allocation2 + $0x70] sm:$0xff]
    %v165 = vld [vmem:[#allocation2 + $0x78] sm:$0xff]
    %v166 = vld [vmem:[%s4] sm:$0x3]
    %v168 = vlaneseq
    %v169 = vshrl.u32 %v168, 7
    %v170 = vsub.s32 0, %v169
    %v171 = vrot.slane %v166, %v170
    %v172 = vlaneseq
    %v173 = vshrl.u32 %v172, 7
    %v174 = vsub.s32 1, %v173
    %v175 = vrot.slane %v166, %v174
    %v194 = vunpack.c.l.b16 %v150
    %v195 = vunpack.c.h.b16 %v150
    %v196 = vunpack.c.l.b16 %v151
    %v197 = vunpack.c.h.b16 %v151
    %v198 = vunpack.c.l.b16 %v152
    %v199 = vunpack.c.h.b16 %v152
    %v200 = vunpack.c.l.b16 %v153
    %v201 = vunpack.c.h.b16 %v153
    %v202 = vunpack.c.l.b16 %v154
    %v203 = vunpack.c.h.b16 %v154
    %v204 = vunpack.c.l.b16 %v155
    %v205 = vunpack.c.h.b16 %v155
    %v206 = vunpack.c.l.b16 %v156
    %v207 = vunpack.c.h.b16 %v156
    %v208 = vunpack.c.l.b16 %v157
    %v209 = vunpack.c.h.b16 %v157
    %v210 = vunpack.c.l.b16 %v158
    %v211 = vunpack.c.h.b16 %v158
    %v212 = vunpack.c.l.b16 %v159
    %v213 = vunpack.c.h.b16 %v159
    %v214 = vunpack.c.l.b16 %v160
    %v215 = vunpack.c.h.b16 %v160
    %v216 = vunpack.c.l.b16 %v161
    %v217 = vunpack.c.h.b16 %v161
    %v218 = vunpack.c.l.b16 %v162
    %v219 = vunpack.c.h.b16 %v162
    %v220 = vunpack.c.l.b16 %v163
    %v221 = vunpack.c.h.b16 %v163
    %v222 = vunpack.c.l.b16 %v164
    %v223 = vunpack.c.h.b16 %v164
    %v224 = vunpack.c.l.b16 %v165
    %v225 = vunpack.c.h.b16 %v165
    %v226 = vpack.c.b16 %v196, %v194
    %v227 = vpack.c.b16 %v197, %v195
    %v228 = vpack.c.b16 %v200, %v198
    %v229 = vpack.c.b16 %v201, %v199
    %v230 = vpack.c.b16 %v204, %v202
    %v231 = vpack.c.b16 %v205, %v203
    %v232 = vpack.c.b16 %v208, %v206
    %v233 = vpack.c.b16 %v209, %v207
    %v234 = vpack.c.b16 %v212, %v210
    %v235 = vpack.c.b16 %v213, %v211
    %v236 = vpack.c.b16 %v216, %v214
    %v237 = vpack.c.b16 %v217, %v215
    %v238 = vpack.c.b16 %v220, %v218
    %v239 = vpack.c.b16 %v221, %v219
    %v240 = vpack.c.b16 %v224, %v222
    %v241 = vpack.c.b16 %v225, %v223
    %258 = vmatprep.subr.bf16.mxu0 %v241
    %259 = vmatpush1.bf16.msra.mxu0 %v240
    %260 = vmatprep.subr.bf16.mxu0 %v239
    %261 = vmatpush1.bf16.msra.mxu0 %v238
    %262 = vmatprep.subr.bf16.mxu0 %v237
    %263 = vmatpush1.bf16.msra.mxu0 %v236
    %264 = vmatprep.subr.bf16.mxu0 %v235
    %265 = vmatpush1.bf16.msra.mxu0 %v234
    %266 = vmatprep.subr.bf16.mxu0 %v233
    %267 = vmatpush1.bf16.msra.mxu0 %v232
    %268 = vmatprep.subr.bf16.mxu0 %v231
    %269 = vmatpush1.bf16.msra.mxu0 %v230
    %270 = vmatprep.subr.bf16.mxu0 %v229
    %271 = vmatpush1.bf16.msra.mxu0 %v228
    %272 = vmatprep.subr.bf16.mxu0 %v227
    %273 = vmatpush1.bf16.msra.mxu0 %v226
    %274 = vmatprep.subr.bf16.mxu0 0
    %275 = vmatpush2.bf16.msra.mxu0 0
    %276 = vmatprep.subr.bf16.mxu0 0
    %277 = vmatpush2.bf16.msra.mxu0 0
    %278 = vmatprep.subr.bf16.mxu0 0
    %279 = vmatpush2.bf16.msra.mxu0 0
    %280 = vmatprep.subr.bf16.mxu0 0
    %281 = vmatpush2.bf16.msra.mxu0 0
    %282 = vmatprep.subr.bf16.mxu0 0
    %283 = vmatpush2.bf16.msra.mxu0 0
    %284 = vmatprep.subr.bf16.mxu0 0
    %285 = vmatpush2.bf16.msra.mxu0 0
    %286 = vmatprep.subr.bf16.mxu0 0
    %287 = vmatpush2.bf16.msra.mxu0 0
    %288 = vmatprep.subr.bf16.mxu0 0
    %289 = vmatpush2.bf16.msra.mxu0 0
    %290 = vmatprep.mubr.bf16.mxu0 0
    %291 = vmatmul.mubr.bf16.gmra.mxu0 %v149
    %v292 = vpop.f32.mrf.mxu0
    %v293 = vadd.f32 %v171, %v292
    %v294 = vpop.f32.mrf.mxu0
    %v295 = vadd.f32 %v175, %v294
    %v296 = vpop.f32.mrf.mxu0
    %v297 = vpop.f32.mrf.mxu0
    %298 = vdwg.mxu0
    %299 = vmax.xlane.f32.xlu0 %v295
    %v300 = vpop.xlane.xlu0 %299
    %v301 = vsub.f32 %v295, %v300
    %v302 = vmul.f32 %v301, 1.442695
    %v303 = vpow.pop %v302
    %304 = vadd.xlane.f32.xlu0 %v303
    %v305 = vpop.xlane.xlu0 %304
    %v306 = vrcp.pop %v305
    %v307 = vmul.f32 %v303, %v306
    %v308 = vmul.f32 %v293, %v307
    %v309 = vmax.f32 %v308, 0.0
    %v310 = vpack.c.bf16 %v309, %v309
    %v311 = vld [vmem:[#allocation4] sm:$0xf]
    %v312 = vld [vmem:[#allocation4 + $0x4] sm:$0xf]
    %v313 = vld [vmem:[#allocation4 + $0x8] sm:$0xf]
    %v314 = vld [vmem:[#allocation4 + $0xc] sm:$0xf]
    %v315 = vld [vmem:[#allocation4 + $0x10] sm:$0xf]
    %v316 = vld [vmem:[#allocation4 + $0x14] sm:$0xf]
    %v317 = vld [vmem:[#allocation4 + $0x18] sm:$0xf]
    %v318 = vld [vmem:[#allocation4 + $0x1c] sm:$0xf]
    %v319 = vld [vmem:[#allocation4 + $0x20] sm:$0xf]
    %v320 = vld [vmem:[#allocation4 + $0x24] sm:$0xf]
    %v321 = vld [vmem:[#allocation4 + $0x28] sm:$0xf]
    %v322 = vld [vmem:[#allocation4 + $0x2c] sm:$0xf]
    %v323 = vld [vmem:[#allocation4 + $0x30] sm:$0xf]
    %v324 = vld [vmem:[#allocation4 + $0x34] sm:$0xf]
    %v325 = vld [vmem:[#allocation4 + $0x38] sm:$0xf]
    %v326 = vld [vmem:[#allocation4 + $0x3c] sm:$0xf]
    %v327 = vld [vmem:[%s6] sm:$0x1]
    %v329 = vlaneseq
    %v330 = vshrl.u32 %v329, 7
    %v331 = vsub.s32 0, %v330
    %v332 = vrot.slane %v327, %v331
    %v350 = vunpack.c.l.b16 %v311
    %v351 = vunpack.c.l.b16 %v312
    %v352 = vunpack.c.l.b16 %v313
    %v353 = vunpack.c.l.b16 %v314
    %v354 = vunpack.c.l.b16 %v315
    %v355 = vunpack.c.l.b16 %v316
    %v356 = vunpack.c.l.b16 %v317
    %v357 = vunpack.c.l.b16 %v318
    %v358 = vunpack.c.l.b16 %v319
    %v359 = vunpack.c.l.b16 %v320
    %v360 = vunpack.c.l.b16 %v321
    %v361 = vunpack.c.l.b16 %v322
    %v362 = vunpack.c.l.b16 %v323
    %v363 = vunpack.c.l.b16 %v324
    %v364 = vunpack.c.l.b16 %v325
    %v365 = vunpack.c.l.b16 %v326
    %v366 = vpack.c.b16 %v351, %v350
    %v367 = vpack.c.b16 %v353, %v352
    %v368 = vpack.c.b16 %v355, %v354
    %v369 = vpack.c.b16 %v357, %v356
    %v370 = vpack.c.b16 %v359, %v358
    %v371 = vpack.c.b16 %v361, %v360
    %v372 = vpack.c.b16 %v363, %v362
    %v373 = vpack.c.b16 %v365, %v364
    %382 = vmatprep.subr.bf16.mxu0 0
    %383 = vmatpush1.bf16.msra.mxu0 %v373
    %384 = vmatprep.subr.bf16.mxu0 0
    %385 = vmatpush1.bf16.msra.mxu0 %v372
    %386 = vmatprep.subr.bf16.mxu0 0
    %387 = vmatpush1.bf16.msra.mxu0 %v371
    %388 = vmatprep.subr.bf16.mxu0 0
    %389 = vmatpush1.bf16.msra.mxu0 %v370
    %390 = vmatprep.subr.bf16.mxu0 0
    %391 = vmatpush1.bf16.msra.mxu0 %v369
    %392 = vmatprep.subr.bf16.mxu0 0
    %393 = vmatpush1.bf16.msra.mxu0 %v368
    %394 = vmatprep.subr.bf16.mxu0 0
    %395 = vmatpush1.bf16.msra.mxu0 %v367
    %396 = vmatprep.subr.bf16.mxu0 0
    %397 = vmatpush1.bf16.msra.mxu0 %v366
    %398 = vmatprep.subr.bf16.mxu0 0
    %399 = vmatpush2.bf16.msra.mxu0 0
    %400 = vmatprep.subr.bf16.mxu0 0
    %401 = vmatpush2.bf16.msra.mxu0 0
    %402 = vmatprep.subr.bf16.mxu0 0
    %403 = vmatpush2.bf16.msra.mxu0 0
    %404 = vmatprep.subr.bf16.mxu0 0
    %405 = vmatpush2.bf16.msra.mxu0 0
    %406 = vmatprep.subr.bf16.mxu0 0
    %407 = vmatpush2.bf16.msra.mxu0 0
    %408 = vmatprep.subr.bf16.mxu0 0
    %409 = vmatpush2.bf16.msra.mxu0 0
    %410 = vmatprep.subr.bf16.mxu0 0
    %411 = vmatpush2.bf16.msra.mxu0 0
    %412 = vmatprep.subr.bf16.mxu0 0
    %413 = vmatpush2.bf16.msra.mxu0 0
    %414 = vmatprep.mubr.bf16.mxu0 0
    %415 = vmatmul.mubr.bf16.gmra.mxu0 %v310
    %v416 = vpop.f32.mrf.mxu0
    %v417 = vadd.f32 %v332, %v416
    %v418 = vpop.f32.mrf.mxu0
    %v419 = vpop.f32.mrf.mxu0
    %v420 = vpop.f32.mrf.mxu0
    %421 = vdwg.mxu0
    %v422 = vpack.c.bf16 %v417, %v417
    %423 = vst [vmem:[%s7] sm:$0xf] %v422
    // Predicated region
    $region38: #{mlp_attention_forward.1} parent=1 // pred_check
      _
    $region39: #{mlp_attention_forward.1} parent=1 // pred_check_branch
      %425 = sbr.rel (0) target = $region41
    $region40: #{mlp_attention_forward.1} parent=1 // pred_region
      _
    $region41: #{mlp_attention_forward.1} parent=1 // pred_fallthru
      _
    // Predicated region
    $region42: #{mlp_attention_forward.1} parent=1 // pred_check
      _
    $region43: #{mlp_attention_forward.1} parent=1 // pred_check_branch
      %427 = sbr.rel (0) target = $region45
    $region44: #{mlp_attention_forward.1} parent=1 // pred_region
      _
    $region45: #{mlp_attention_forward.1} parent=1 // pred_fallthru
      _
    %428 = vsyncpa [#allocation3], 1
    %429 = vsyncpa [#allocation5], 1

</llo_original>
